<compile_context>
chip_gen: v7x
topology: tpu7x:2x2x1
jax: 0.10.0
libtpu: 0.0.40
codegen_flags: <defaults>
</compile_context>

<pallas_src>
import functools
import math

import jax
import jax.numpy as jnp
from jax.experimental import pallas as pl
from jax.experimental.pallas import tpu as pltpu


def _round_up(v: int, m: int) -> int:
    return ((v + m - 1) // m) * m


def _maybe_pad(a, pads):
    # Skip the HBM read+write copy when no padding is actually needed.
    if all(lo == 0 and hi == 0 for lo, hi in pads):
        return a
    return jnp.pad(a, pads)


def _lora_linear_kernel(x_ref, w_ref, b_ref, xa_ref, bmat_ref, o_ref, acc_ref):
    # x:    [tm, tk]     block of the flattened input        (compute dtype)
    # w:    [tn, tk]     block of W [out, in]                (compute dtype)
    # b:    [1,  tn]     block of bias                       (f32)
    # xa:   [tm, r_pad]  block of (x @ A.T) * (alpha/r)      (compute dtype)
    # bmat: [tn, r_pad]  block of lora_B [out, r]            (compute dtype)
    # acc:  [tm, tn]     f32 scratch accumulator
    k = pl.program_id(2)

    @pl.when(k == 0)
    def _init():
        acc_ref[...] = jnp.zeros_like(acc_ref)

    # Base path: x @ W.T -> contract the 'in' axis of both operands (no .T).
    acc_ref[...] += jax.lax.dot_general(
        x_ref[...], w_ref[...],
        dimension_numbers=(((1,), (1,)), ((), ())),
        preferred_element_type=jnp.float32,
    )

    @pl.when(k == pl.num_programs(2) - 1)
    def _finalize():
        # LoRA low-rank path: the rank-r intermediate (scaling already folded
        # in) was precomputed outside the kernel, so the finalize is a single
        # small (tm, r) x (tn, r)^T MXU op plus the bias add, once per tile.
        lora_out = jax.lax.dot_general(
            xa_ref[...], bmat_ref[...],
            dimension_numbers=(((1,), (1,)), ((), ())),
            preferred_element_type=jnp.float32,
        )
        o_ref[...] = (acc_ref[...] + lora_out + b_ref[...]).astype(o_ref.dtype)


def lora_linear(x, weight, bias, lora_A, lora_B, *, alpha, r,
                tm=256, tn=512, tk=1024,
                compute_dtype=jnp.bfloat16, out_dtype=None):
    """x: [..., in_features] -> [..., out_features].

    Weights keep PyTorch conventions: W [out, in], A [r, in], B [out, r].
    MXU operands are cast to `compute_dtype` (bf16 by default, per v5e/v6e/v7x
    guidance); accumulation, scaling and bias stay in f32.  Tile sizes are
    tunable per generation (keep v7x working sets about half of a v6e config).
    """
    out_features, in_features = weight.shape
    scaling = alpha / r
    out_dtype = x.dtype if out_dtype is None else out_dtype

    lead_shape = x.shape[:-1]
    m = 1
    for d in lead_shape:
        m *= d
    x2d = x.reshape(m, in_features)

    if bias is None:
        bias = jnp.zeros((out_features,), dtype=jnp.float32)

    # Rank-r intermediate precomputed with plain XLA (tiny [M, r] GEMM); the
    # alpha/r scaling is folded in so the kernel finalize is a single matmul.
    xa = (x2d.astype(jnp.float32) @ lora_A.astype(jnp.float32).T) * scaling

    itemsize = jnp.dtype(compute_dtype).itemsize
    sub = {4: 8, 2: 16, 1: 32}.get(itemsize, 8)   # sublane rounding per dtype

    # ---- choose tiles and padded dims (lane-dense output tiles) ----
    tm = min(tm, _round_up(m, sub))
    tn = min(tn, _round_up(out_features, 128))
    tk = min(tk, _round_up(in_features, 128))
    m_pad = _round_up(m, tm)
    n_pad = _round_up(out_features, tn)
    k_pad = _round_up(in_features, tk)
    r_pad = _round_up(r, sub)

    # Expose >= 2 parallel blocks when possible so both v7x TensorCores get
    # work (a (1, 1, K) grid serializes on a single core).
    if m_pad // tm == 1 and n_pad // tn == 1:
        if tn % 256 == 0:
            tn //= 2
        elif tm % (2 * sub) == 0:
            tm //= 2

    # ---- pad (only when needed) and cast operands ----
    # NOTE: in production, pre-pad / pre-cast the frozen W, A, B once outside
    # the hot path; here padding is skipped whenever shapes already tile.
    x_p = _maybe_pad(x2d, ((0, m_pad - m), (0, k_pad - in_features))).astype(compute_dtype)
    w_p = _maybe_pad(weight, ((0, n_pad - out_features), (0, k_pad - in_features))).astype(compute_dtype)
    b_p = _maybe_pad(bias.astype(jnp.float32).reshape(1, out_features),
                     ((0, 0), (0, n_pad - out_features)))
    xa_p = _maybe_pad(xa, ((0, m_pad - m), (0, r_pad - r))).astype(compute_dtype)
    bm_p = _maybe_pad(lora_B, ((0, n_pad - out_features), (0, r_pad - r))).astype(compute_dtype)

    grid = (m_pad // tm, n_pad // tn, k_pad // tk)

    bytes_accessed = (
        x_p.size * x_p.dtype.itemsize + w_p.size * w_p.dtype.itemsize
        + b_p.size * b_p.dtype.itemsize + xa_p.size * xa_p.dtype.itemsize
        + bm_p.size * bm_p.dtype.itemsize
        + m_pad * n_pad * jnp.dtype(out_dtype).itemsize
    )
    cost = pl.CostEstimate(
        flops=2 * m_pad * n_pad * k_pad + 2 * m_pad * n_pad * r_pad,
        transcendentals=0,
        bytes_accessed=bytes_accessed,
    )

    out_p = pl.pallas_call(
        _lora_linear_kernel,
        out_shape=jax.ShapeDtypeStruct((m_pad, n_pad), out_dtype),
        grid_spec=pltpu.PrefetchScalarGridSpec(
            num_scalar_prefetch=0,
            grid=grid,
            in_specs=[
                pl.BlockSpec((tm, tk), lambda i, j, k: (i, k)),       # x
                pl.BlockSpec((tn, tk), lambda i, j, k: (j, k)),       # W [out, in]
                pl.BlockSpec((1, tn), lambda i, j, k: (0, j)),        # bias
                pl.BlockSpec((tm, r_pad), lambda i, j, k: (i, 0)),    # (x@A.T)*scale
                pl.BlockSpec((tn, r_pad), lambda i, j, k: (j, 0)),    # lora_B
            ],
            out_specs=pl.BlockSpec((tm, tn), lambda i, j, k: (i, j)),
            scratch_shapes=[
                pltpu.VMEM((tm, tn), jnp.float32),   # f32 base accumulator
            ],
        ),
        compiler_params=pltpu.CompilerParams(
            dimension_semantics=("parallel", "parallel", "arbitrary"),
            vmem_limit_bytes=48 * 1024 * 1024,
        ),
        cost_estimate=cost,
    )(x_p, w_p, b_p, xa_p, bm_p)

    out2d = out_p[:m, :out_features]
    return out2d.reshape(*lead_shape, out_features)


def _reference(x, weight, bias, lora_A, lora_B, alpha, r):
    base = x @ weight.T + bias
    return base + ((x @ lora_A.T) @ lora_B.T) * (alpha / r)


if __name__ == "__main__":
    key = jax.random.PRNGKey(0)

    # ---- Test 1: small shapes consistent with the module's demo usage ----
    batch, seq = 2, 8
    in_features, out_features = 32, 64
    r, alpha = 8, 16.0

    kx, kw, kb, ka, kbm, k2 = jax.random.split(key, 6)
    x = jax.random.normal(kx, (batch, seq, in_features), dtype=jnp.float32)
    weight = jax.random.normal(kw, (out_features, in_features), dtype=jnp.float32) * 0.05
    bias = jax.random.normal(kb, (out_features,), dtype=jnp.float32) * 0.01
    # kaiming_uniform_(a=sqrt(5)) on [r, in]: bound = 1/sqrt(fan_in)
    bound = 1.0 / math.sqrt(in_features)
    lora_A = jax.random.uniform(ka, (r, in_features), dtype=jnp.float32,
                                minval=-bound, maxval=bound)
    # PyTorch inits lora_B to zeros; use small nonzero values so the LoRA path
    # is exercised (forward semantics unchanged).
    lora_B = jax.random.normal(kbm, (out_features, r), dtype=jnp.float32) * 0.02

    ref = _reference(x, weight, bias, lora_A, lora_B, alpha, r)

    # 1a) f32 MXU operands: matches the f32 PyTorch reference tightly.
    out_f32 = lora_linear(x, weight, bias, lora_A, lora_B, alpha=alpha, r=r,
                          compute_dtype=jnp.float32)
    out_f32 = jax.block_until_ready(out_f32)
    assert out_f32.shape == (batch, seq, out_features)
    assert jnp.allclose(out_f32, ref, atol=1e-4, rtol=1e-4)

    # 1b) default bf16 MXU operands (f32 accumulation): small drift expected.
    out_bf = lora_linear(x, weight, bias, lora_A, lora_B, alpha=alpha, r=r)
    out_bf = jax.block_until_ready(out_bf)
    assert out_bf.shape == (batch, seq, out_features)
    assert jnp.allclose(out_bf, ref, atol=2e-2, rtol=2e-2)

    # ---- Test 2: multi-tile (i, j, k) grid + M padding, bf16 operands ----
    b2, s2, in2, out2, r2, alpha2 = 2, 72, 384, 384, 8, 32.0
    kx2, kw2, kb2, ka2, kbm2 = jax.random.split(k2, 5)
    x2 = jax.random.normal(kx2, (b2, s2, in2), dtype=jnp.float32)
    w2 = jax.random.normal(kw2, (out2, in2), dtype=jnp.float32) * 0.02
    bias2 = jax.random.normal(kb2, (out2,), dtype=jnp.float32) * 0.01
    a2 = jax.random.uniform(ka2, (r2, in2), dtype=jnp.float32,
                            minval=-1.0 / math.sqrt(in2), maxval=1.0 / math.sqrt(in2))
    bm2 = jax.random.normal(kbm2, (out2, r2), dtype=jnp.float32) * 0.02

    out_b = lora_linear(x2, w2, bias2, a2, bm2, alpha=alpha2, r=r2,
                        tm=128, tn=128, tk=128)   # grid (2, 3, 3)
    out_b = jax.block_until_ready(out_b)
    ref_b = _reference(x2, w2, bias2, a2, bm2, alpha2, r2)
    assert out_b.shape == (b2, s2, out2)
    assert jnp.allclose(out_b, ref_b, atol=5e-2, rtol=5e-2)

    print("KERNEL_OK")
</pallas_src>

<mosaic_0001>
module attributes {stable_mosaic.version = 11 : i64} {
  func.func @_lora_linear_kernel(%arg0: i32, %arg1: i32, %arg2: i32, %arg3: memref<8x128xf32, #tpu.memory_space<vmem>>, %arg4: memref<128x128xf32, #tpu.memory_space<vmem>>, %arg5: memref<1x128xf32, #tpu.memory_space<vmem>>, %arg6: memref<8x8xf32, #tpu.memory_space<vmem>>, %arg7: memref<128x8xf32, #tpu.memory_space<vmem>>, %arg8: memref<8x128xf32, #tpu.memory_space<vmem>>, %arg9: memref<8x128xf32, #tpu.memory_space<vmem>>) attributes {dimension_semantics = [#tpu.dimension_semantics<parallel>, #tpu.dimension_semantics<parallel>, #tpu.dimension_semantics<arbitrary>], iteration_bounds = array<i64: 2, 1, 1>, scalar_prefetch = 0 : i64, scratch_operands = 1 : i64, tpu.core_type = #tpu.core_type<tc>, window_params = [{transform_indices = @transform_0, window_bounds = array<i64: 8, 128>}, {transform_indices = @transform_1, window_bounds = array<i64: 128, 128>}, {transform_indices = @transform_2, window_bounds = array<i64: 1, 128>}, {transform_indices = @transform_3, window_bounds = array<i64: 8, 8>}, {transform_indices = @transform_4, window_bounds = array<i64: 128, 8>}, {transform_indices = @transform_5, window_bounds = array<i64: 8, 128>}]} {
    %c0_i32 = arith.constant 0 : i32
    %0 = arith.cmpi eq, %arg2, %c0_i32 : i32
    %1 = arith.extui %0 : i1 to i32
    %c0_i32_0 = arith.constant 0 : i32
    %2 = arith.cmpi ne, %1, %c0_i32_0 : i32
    scf.if %2 {
      %cst_10 = arith.constant 0.000000e+00 : f32
      %12 = vector.broadcast %cst_10 : f32 to vector<8x128xf32>
      %c0_11 = arith.constant 0 : index
      %c0_12 = arith.constant 0 : index
      %13 = vector.load %arg9[%c0_11, %c0_12] : memref<8x128xf32, #tpu.memory_space<vmem>>, vector<8x128xf32>
      tpu.vector_store %arg9[%c0_11, %c0_12], %12 {strides = array<i32>} : memref<8x128xf32, #tpu.memory_space<vmem>>, vector<8x128xf32>,
    } else {
    }
    %c0 = arith.constant 0 : index
    %c0_1 = arith.constant 0 : index
    %3 = vector.load %arg9[%c0, %c0_1] : memref<8x128xf32, #tpu.memory_space<vmem>>, vector<8x128xf32>
    %c0_2 = arith.constant 0 : index
    %c0_3 = arith.constant 0 : index
    %4 = vector.load %arg3[%c0_2, %c0_3] : memref<8x128xf32, #tpu.memory_space<vmem>>, vector<8x128xf32>
    %c0_4 = arith.constant 0 : index
    %c0_5 = arith.constant 0 : index
    %5 = vector.load %arg4[%c0_4, %c0_5] : memref<128x128xf32, #tpu.memory_space<vmem>>, vector<128x128xf32>
    %cst = arith.constant dense<0.000000e+00> : vector<8x128xf32>
    %6 = tpu.matmul %4, %5, %cst {dimension_numbers = #tpu.dot_dimension_numbers<[1], [1], [0], [0], [0, 0, 1, 0], [], []>} : vector<8x128xf32>, vector<128x128xf32>, vector<8x128xf32> -> vector<8x128xf32>
    %7 = arith.addf %3, %6 : vector<8x128xf32>
    %c0_6 = arith.constant 0 : index
    %c0_7 = arith.constant 0 : index
    %8 = vector.load %arg9[%c0_6, %c0_7] : memref<8x128xf32, #tpu.memory_space<vmem>>, vector<8x128xf32>
    tpu.vector_store %arg9[%c0_6, %c0_7], %7 {strides = array<i32>} : memref<8x128xf32, #tpu.memory_space<vmem>>, vector<8x128xf32>,
    %c0_i32_8 = arith.constant 0 : i32
    %9 = arith.cmpi eq, %arg2, %c0_i32_8 : i32
    %10 = arith.extui %9 : i1 to i32
    %c0_i32_9 = arith.constant 0 : i32
    %11 = arith.cmpi ne, %10, %c0_i32_9 : i32
    scf.if %11 {
      %c0_10 = arith.constant 0 : index
      %c0_11 = arith.constant 0 : index
      %12 = vector.load %arg6[%c0_10, %c0_11] : memref<8x8xf32, #tpu.memory_space<vmem>>, vector<8x8xf32>
      %c0_12 = arith.constant 0 : index
      %c0_13 = arith.constant 0 : index
      %13 = vector.load %arg7[%c0_12, %c0_13] : memref<128x8xf32, #tpu.memory_space<vmem>>, vector<128x8xf32>
      %cst_14 = arith.constant dense<0.000000e+00> : vector<8x128xf32>
      %14 = tpu.matmul %12, %13, %cst_14 {dimension_numbers = #tpu.dot_dimension_numbers<[1], [1], [0], [0], [0, 0, 1, 0], [], []>} : vector<8x8xf32>, vector<128x8xf32>, vector<8x128xf32> -> vector<8x128xf32>
      %c0_15 = arith.constant 0 : index
      %c0_16 = arith.constant 0 : index
      %15 = vector.load %arg9[%c0_15, %c0_16] : memref<8x128xf32, #tpu.memory_space<vmem>>, vector<8x128xf32>
      %16 = arith.addf %15, %14 : vector<8x128xf32>
      %c0_17 = arith.constant 0 : index
      %c0_18 = arith.constant 0 : index
      %17 = vector.load %arg5[%c0_17, %c0_18] : memref<1x128xf32, #tpu.memory_space<vmem>>, vector<1x128xf32>
      %18 = vector.broadcast %17 : vector<1x128xf32> to vector<8x128xf32>
      %19 = arith.addf %16, %18 : vector<8x128xf32>
      %c0_19 = arith.constant 0 : index
      %c0_20 = arith.constant 0 : index
      %20 = vector.load %arg8[%c0_19, %c0_20] : memref<8x128xf32, #tpu.memory_space<vmem>>, vector<8x128xf32>
      tpu.vector_store %arg8[%c0_19, %c0_20], %19 {strides = array<i32>} : memref<8x128xf32, #tpu.memory_space<vmem>>, vector<8x128xf32>,
    } else {
    }
    return
  }
  func.func @transform_0(%arg0: i32, %arg1: i32, %arg2: i32) -> (i32, i32) {
    %c0_i32 = arith.constant 0 : i32
    return %arg0, %arg2 : i32, i32
  }
  func.func @transform_1(%arg0: i32, %arg1: i32, %arg2: i32) -> (i32, i32) {
    %c0_i32 = arith.constant 0 : i32
    return %arg1, %arg2 : i32, i32
  }
  func.func @transform_2(%arg0: i32, %arg1: i32, %arg2: i32) -> (i32, i32) {
    %c0_i32 = arith.constant 0 : i32
    %c0_i32_0 = arith.constant 0 : i32
    return %c0_i32, %arg1 : i32, i32
  }
  func.func @transform_3(%arg0: i32, %arg1: i32, %arg2: i32) -> (i32, i32) {
    %c0_i32 = arith.constant 0 : i32
    %c0_i32_0 = arith.constant 0 : i32
    return %arg0, %c0_i32 : i32, i32
  }
  func.func @transform_4(%arg0: i32, %arg1: i32, %arg2: i32) -> (i32, i32) {
    %c0_i32 = arith.constant 0 : i32
    %c0_i32_0 = arith.constant 0 : i32
    return %arg1, %c0_i32 : i32, i32
  }
  func.func @transform_5(%arg0: i32, %arg1: i32, %arg2: i32) -> (i32, i32) {
    %c0_i32 = arith.constant 0 : i32
    return %arg0, %arg1 : i32, i32
  }
}

</mosaic_0001>

<llo_original>
// kernel: tpu_custom_call.1
$region0: #{tpu_custom_call.1}
  #allocation0 [shape = 'u32[]', space=smem, size = 0x4, offset = 0x4, fixed_abs, tag = 'smem constant byte address 0x4 - core index']
  #allocation1 [shape = 'u32[144,128]{1,0:T(1,128)}', space=vmem, size = 0x12000, scoped, tag = 'internal scratch']
  #allocation2 [shape = 'f32[8,128]{1,0:T(8,128)}', space=vmem, size = 0x1000, scoped, tag = 'scratch operand']
  %s0 = inlined_call_operand.vmem [shape: f32[16,128], index: 0, kind: input, shape index: {}]
  %s1 = inlined_call_operand.vmem [shape: f32[128,128], index: 1, kind: input, shape index: {}]
  %s2 = inlined_call_operand.vmem [shape: f32[1,128], index: 2, kind: input, shape index: {}]
  %s3 = inlined_call_operand.vmem [shape: f32[16,8], index: 3, kind: input, shape index: {}]
  %s4 = inlined_call_operand.vmem [shape: f32[128,8], index: 4, kind: input, shape index: {}]
  %s5 = inlined_call_operand.hbm [shape: f32[16,128], index: 5, kind: output, shape index: {}]
  %s6 = sld [smem:[#allocation0]]
  $region61: #{tpu_custom_call.1} parent=0
    _
  %s8 = ssub.s32 1, %s6
  %s9 = scalar_select 0, %s8, %s6
  $region1: #{tpu_custom_call.1} parent=0
    #allocation3 [shape = 'u8[8192]{0}', space=vmem, size = 0x2000, scoped, tag = 'output window, operand 0']
    #allocation4 [shape = 's32[2]{0}', space=sflag, size = 0x8, scoped, tag = 'scoped memory for tpu_custom_call.1']
    %10 = vsyncpa [#allocation4], 0
    %s11 = scalar_lea.sflag [#allocation4], 1
    %12 = vsyncpa %s11, 0
    loop: start=0, step=1, limit=4
    $region2: #{tpu_custom_call.1} parent=1 // loop_pre_header
      _
    $region3: #{tpu_custom_call.1} parent=1 // loop_header
      %s14 = sphi 0, %s18
      %p15 = scmp.ge.s32.totalorder %s14, 4
      %s21 = sphi 0, %s40
      %s22 = sphi 0, %s36
      %s23 = sphi 0, %s32
      %s24 = sphi 0, %s21
      %s25 = sphi 0, %s22
      %s26 = sphi 0, %s23
      %s27 = sphi 0, %s24
      %s28 = sphi 0, %s25
      %s29 = sphi 0, %s26
      %s45 = sphi 0, %s47
      %s48 = sphi 0, %s45
      %s49 = sphi 0, %s48
      %s65 = sphi 0, %s49
      %s73 = sphi 0, %s75
      %s76 = sphi 0, %s73
      %s77 = sphi 0, %s76
      %s93 = sphi 0, %s77
      %s99 = sphi 0, %s101
      %s102 = sphi 0, %s99
      %s103 = sphi 0, %s102
      %s119 = sphi 0, %s103
      %s125 = sphi 0, %s127
      %s128 = sphi 0, %s125
      %s129 = sphi 0, %s128
      %s145 = sphi 0, %s129
      %s151 = sphi 0, %s153
      %s154 = sphi 0, %s151
      %s155 = sphi 0, %s154
      %s171 = sphi 0, %s155
      %s179 = sphi 0, %s181
      %s182 = sphi 0, %s179
      %s183 = sphi 0, %s182
      %s199 = sphi 0, %s183
    $region4: #{tpu_custom_call.1} parent=1 // loop_header_branch
      %17 = sbr.rel (%p15) target = $region8
    $region5: #{tpu_custom_call.1} parent=1 // loop_body
      %s19 = ssub.s32 %s14, 1
      %s20 = ssub.s32 %s14, 2
      %s30 = sadd.s32 1, %s23
      %p31 = scmp.ge.s32.totalorder %s30, 1
      %s32 = scalar_select %p31, 0, %s30
      %s33 = sadd.s32 1, %s22
      %s34 = scalar_select %p31, %s33, %s22
      %p35 = scmp.ge.s32.totalorder %s34, 1
      %s36 = scalar_select %p35, 0, %s34
      %s37 = sadd.s32 1, %s21
      %s38 = scalar_select %p35, %s37, %s21
      %p39 = scmp.ge.s32.totalorder %s38, 2
      %s40 = scalar_select %p39, 0, %s38
      %s41 = ssub.s32 %s21, %s40
      %s42 = ssub.s32 %s23, %s32
      %s43 = sor.u32 %s41, %s42
      %p44 = scmp.eq.s32.totalorder %s43, 0
      %s46 = sadd.s32 %s45, 1
      %s47 = scalar_select %p44, %s45, %s46
      %p50 = pneg %p44
      %p51 = scmp.eq.s32.totalorder %s14, 1
      %p52 = por %p50, %p51
      %p53 = scmp.ne.s32.totalorder %s45, %s48
      %p54 = scmp.eq.s32.totalorder %s14, 0
      %p55 = por %p53, %p54
      %p56 = scmp.ne.s32.totalorder %s45, %s48
      %p57 = scmp.eq.s32.totalorder %s19, 1
      %p58 = por %p56, %p57
      %p59 = scmp.ne.s32.totalorder %s48, %s49
      %p60 = scmp.eq.s32.totalorder %s19, 0
      %p61 = por %p59, %p60
      %p62 = scmp.ne.s32.totalorder %s48, %s49
      %p63 = scmp.eq.s32.totalorder %s20, 1
      %p64 = por %p62, %p63
      %p66 = scmp.ne.s32.totalorder %s49, %s65
      %p67 = scmp.eq.s32.totalorder %s20, 0
      %p68 = por %p66, %p67
      %s69 = ssub.s32 %s22, %s36
      %s70 = ssub.s32 %s23, %s32
      %s71 = sor.u32 %s69, %s70
      %p72 = scmp.eq.s32.totalorder %s71, 0
      %s74 = sadd.s32 %s73, 1
      %s75 = scalar_select %p72, %s73, %s74
      %p78 = pneg %p72
      %p79 = scmp.eq.s32.totalorder %s14, 1
      %p80 = por %p78, %p79
      %p81 = scmp.ne.s32.totalorder %s73, %s76
      %p82 = scmp.eq.s32.totalorder %s14, 0
      %p83 = por %p81, %p82
      %p84 = scmp.ne.s32.totalorder %s73, %s76
      %p85 = scmp.eq.s32.totalorder %s19, 1
      %p86 = por %p84, %p85
      %p87 = scmp.ne.s32.totalorder %s76, %s77
      %p88 = scmp.eq.s32.totalorder %s19, 0
      %p89 = por %p87, %p88
      %p90 = scmp.ne.s32.totalorder %s76, %s77
      %p91 = scmp.eq.s32.totalorder %s20, 1
      %p92 = por %p90, %p91
      %p94 = scmp.ne.s32.totalorder %s77, %s93
      %p95 = scmp.eq.s32.totalorder %s20, 0
      %p96 = por %p94, %p95
      %s97 = ssub.s32 %s22, %s36
      %p98 = scmp.eq.s32.totalorder %s97, 0
      %s100 = sadd.s32 %s99, 1
      %s101 = scalar_select %p98, %s99, %s100
      %p104 = pneg %p98
      %p105 = scmp.eq.s32.totalorder %s14, 1
      %p106 = por %p104, %p105
      %p107 = scmp.ne.s32.totalorder %s99, %s102
      %p108 = scmp.eq.s32.totalorder %s14, 0
      %p109 = por %p107, %p108
      %p110 = scmp.ne.s32.totalorder %s99, %s102
      %p111 = scmp.eq.s32.totalorder %s19, 1
      %p112 = por %p110, %p111
      %p113 = scmp.ne.s32.totalorder %s102, %s103
      %p114 = scmp.eq.s32.totalorder %s19, 0
      %p115 = por %p113, %p114
      %p116 = scmp.ne.s32.totalorder %s102, %s103
      %p117 = scmp.eq.s32.totalorder %s20, 1
      %p118 = por %p116, %p117
      %p120 = scmp.ne.s32.totalorder %s103, %s119
      %p121 = scmp.eq.s32.totalorder %s20, 0
      %p122 = por %p120, %p121
      %s123 = ssub.s32 %s21, %s40
      %p124 = scmp.eq.s32.totalorder %s123, 0
      %s126 = sadd.s32 %s125, 1
      %s127 = scalar_select %p124, %s125, %s126
      %p130 = pneg %p124
      %p131 = scmp.eq.s32.totalorder %s14, 1
      %p132 = por %p130, %p131
      %p133 = scmp.ne.s32.totalorder %s125, %s128
      %p134 = scmp.eq.s32.totalorder %s14, 0
      %p135 = por %p133, %p134
      %p136 = scmp.ne.s32.totalorder %s125, %s128
      %p137 = scmp.eq.s32.totalorder %s19, 1
      %p138 = por %p136, %p137
      %p139 = scmp.ne.s32.totalorder %s128, %s129
      %p140 = scmp.eq.s32.totalorder %s19, 0
      %p141 = por %p139, %p140
      %p142 = scmp.ne.s32.totalorder %s128, %s129
      %p143 = scmp.eq.s32.totalorder %s20, 1
      %p144 = por %p142, %p143
      %p146 = scmp.ne.s32.totalorder %s129, %s145
      %p147 = scmp.eq.s32.totalorder %s20, 0
      %p148 = por %p146, %p147
      %s149 = ssub.s32 %s22, %s36
      %p150 = scmp.eq.s32.totalorder %s149, 0
      %s152 = sadd.s32 %s151, 1
      %s153 = scalar_select %p150, %s151, %s152
      %p156 = pneg %p150
      %p157 = scmp.eq.s32.totalorder %s14, 1
      %p158 = por %p156, %p157
      %p159 = scmp.ne.s32.totalorder %s151, %s154
      %p160 = scmp.eq.s32.totalorder %s14, 0
      %p161 = por %p159, %p160
      %p162 = scmp.ne.s32.totalorder %s151, %s154
      %p163 = scmp.eq.s32.totalorder %s19, 1
      %p164 = por %p162, %p163
      %p165 = scmp.ne.s32.totalorder %s154, %s155
      %p166 = scmp.eq.s32.totalorder %s19, 0
      %p167 = por %p165, %p166
      %p168 = scmp.ne.s32.totalorder %s154, %s155
      %p169 = scmp.eq.s32.totalorder %s20, 1
      %p170 = por %p168, %p169
      %p172 = scmp.ne.s32.totalorder %s155, %s171
      %p173 = scmp.eq.s32.totalorder %s20, 0
      %p174 = por %p172, %p173
      %s175 = ssub.s32 %s21, %s40
      %s176 = ssub.s32 %s22, %s36
      %s177 = sor.u32 %s175, %s176
      %p178 = scmp.eq.s32.totalorder %s177, 0
      %s180 = sadd.s32 %s179, 1
      %s181 = scalar_select %p178, %s179, %s180
      %p184 = pneg %p178
      %p185 = scmp.eq.s32.totalorder %s14, 1
      %p186 = por %p184, %p185
      %p187 = scmp.ne.s32.totalorder %s179, %s182
      %p188 = scmp.eq.s32.totalorder %s14, 0
      %p189 = por %p187, %p188
      %p190 = scmp.ne.s32.totalorder %s179, %s182
      %p191 = scmp.eq.s32.totalorder %s19, 1
      %p192 = por %p190, %p191
      %p193 = scmp.ne.s32.totalorder %s182, %s183
      %p194 = scmp.eq.s32.totalorder %s19, 0
      %p195 = por %p193, %p194
      %p196 = scmp.ne.s32.totalorder %s182, %s183
      %p197 = scmp.eq.s32.totalorder %s20, 1
      %p198 = por %p196, %p197
      %p200 = scmp.ne.s32.totalorder %s183, %s199
      %p201 = scmp.eq.s32.totalorder %s20, 0
      %p202 = por %p200, %p201
      %p203 = scmp.le.s32.totalorder 1, %s14
      %p204 = scmp.lt.s32.totalorder %s14, 3
      %p205 = pnand %p203, %p204
      %p206 = pneg %p205
      // Predicated region
      $region9: #{tpu_custom_call.1} parent=5 // pred_check
        _
      $region10: #{tpu_custom_call.1} parent=5 // pred_check_branch
        %208 = sbr.rel (%p205) target = $region12
      $region11: #{tpu_custom_call.1} parent=5 // pred_region
        %s209 = ssub.s32 %s14, 1
        // Predicated region
        $region13: #{tpu_custom_call.1} parent=11 // pred_check
          %p210 = pneg %p89
        $region14: #{tpu_custom_call.1} parent=11 // pred_check_branch
          %212 = sbr.rel (%p210) target = $region16
        $region15: #{tpu_custom_call.1} parent=11 // pred_region
          %s213 = smul.u32 16, %s25
          %p214 = scmp.lt.s32.totalorder %s213, 15
          %s215 = scalar_select %p214, %s213, 15
          %p216 = scmp.lt.s32.totalorder %s26, 0
          %s217 = scalar_select %p216, %s26, 0
          %s218 = sadd.s32 %s217, %s215
          %s219 = smul.addr %s218, 8
          %s220 = scalar_lea.vmem %s1, %s219
          %s221 = smul.u32 16, %s25
        $region16: #{tpu_custom_call.1} parent=11 // pred_fallthru
          _
        // Predicated region
        $region17: #{tpu_custom_call.1} parent=11 // pred_check
          %p222 = pneg %p115
        $region18: #{tpu_custom_call.1} parent=11 // pred_check_branch
          %224 = sbr.rel (%p222) target = $region20
        $region19: #{tpu_custom_call.1} parent=11 // pred_region
          %p225 = scmp.lt.s32.totalorder %s25, 0
          %s226 = scalar_select %p225, %s25, 0
          %s227 = scalar_lea.vmem %s2, %s226
        $region20: #{tpu_custom_call.1} parent=11 // pred_fallthru
          _
        // Predicated region
        $region21: #{tpu_custom_call.1} parent=11 // pred_check
          %p228 = pneg %p167
        $region22: #{tpu_custom_call.1} parent=11 // pred_check_branch
          %230 = sbr.rel (%p228) target = $region24
        $region23: #{tpu_custom_call.1} parent=11 // pred_region
          %s231 = smul.u32 16, %s25
          %p232 = scmp.lt.s32.totalorder %s231, 15
          %s233 = scalar_select %p232, %s231, 15
          %s234 = smul.addr %s233, 8
          %s235 = scalar_lea.vmem %s4, %s234
          %s236 = smul.u32 16, %s25
        $region24: #{tpu_custom_call.1} parent=11 // pred_fallthru
          _
      $region12: #{tpu_custom_call.1} parent=5 // pred_fallthru
        _
      %p237 = scmp.lt.s32.totalorder %s14, 2
      // Predicated region
      $region25: #{tpu_custom_call.1} parent=5 // pred_check
        %p238 = pneg %p237
      $region26: #{tpu_custom_call.1} parent=5 // pred_check_branch
        %240 = sbr.rel (%p238) target = $region28
      $region27: #{tpu_custom_call.1} parent=5 // pred_region
        // Predicated region
        $region29: #{tpu_custom_call.1} parent=27 // pred_check
          %p241 = pneg %p55
        $region30: #{tpu_custom_call.1} parent=27 // pred_check_branch
          %243 = sbr.rel (%p241) target = $region32
        $region31: #{tpu_custom_call.1} parent=27 // pred_region
          %p244 = scmp.lt.s32.totalorder %s21, 1
          %s245 = scalar_select %p244, %s21, 1
          %p246 = scmp.lt.s32.totalorder %s23, 0
          %s247 = scalar_select %p246, %s23, 0
          %s248 = sadd.s32 %s247, %s245
          %s249 = smul.addr %s248, 8
          %s250 = scalar_lea.vmem %s0, %s249
        $region32: #{tpu_custom_call.1} parent=27 // pred_fallthru
          _
        // Predicated region
        $region33: #{tpu_custom_call.1} parent=27 // pred_check
          %p251 = pneg %p135
        $region34: #{tpu_custom_call.1} parent=27 // pred_check_branch
          %253 = sbr.rel (%p251) target = $region36
        $region35: #{tpu_custom_call.1} parent=27 // pred_region
          %p254 = scmp.lt.s32.totalorder %s21, 1
          %s255 = scalar_select %p254, %s21, 1
          %s256 = smul.addr %s255, 8
          %s257 = scalar_lea.vmem %s3, %s256
        $region36: #{tpu_custom_call.1} parent=27 // pred_fallthru
          _
      $region28: #{tpu_custom_call.1} parent=5 // pred_fallthru
        _
      %p258 = scmp.le.s32.totalorder 1, %s14
      %p259 = scmp.lt.s32.totalorder %s14, 3
      %p260 = pnand %p258, %p259
      %p261 = pneg %p260
      // Predicated region
      $region37: #{tpu_custom_call.1} parent=5 // pred_check
        _
      $region38: #{tpu_custom_call.1} parent=5 // pred_check_branch
        %263 = sbr.rel (%p260) target = $region40
      $region39: #{tpu_custom_call.1} parent=5 // pred_region
        %s264 = ssub.s32 %s14, 1
        %p265 = scmp.lt.s32.totalorder %s24, 1
        %s266 = scalar_select %p265, %s24, 1
        %p267 = scmp.lt.s32.totalorder %s26, 0
        %s268 = scalar_select %p267, %s26, 0
        %s269 = sadd.s32 %s268, %s266
        %s270 = smul.addr %s269, 8
        %s271 = scalar_lea.vmem %s0, %s270
        %p272 = pneg %p61
        %p273 = pneg %p58
        %s274 = smul.u32 16, %s25
        %p275 = scmp.lt.s32.totalorder %s274, 15
        %s276 = scalar_select %p275, %s274, 15
        %p277 = scmp.lt.s32.totalorder %s26, 0
        %s278 = scalar_select %p277, %s26, 0
        %s279 = sadd.s32 %s278, %s276
        %s280 = smul.addr %s279, 8
        %s281 = scalar_lea.vmem %s1, %s280
        %p282 = pneg %p89
        %p283 = pneg %p86
        %p284 = scmp.lt.s32.totalorder %s25, 0
        %s285 = scalar_select %p284, %s25, 0
        %s286 = scalar_lea.vmem %s2, %s285
        %p287 = pneg %p115
        %p288 = pneg %p112
        %p289 = scmp.lt.s32.totalorder %s24, 1
        %s290 = scalar_select %p289, %s24, 1
        %s291 = smul.addr %s290, 8
        %s292 = scalar_lea.vmem %s3, %s291
        %p293 = pneg %p141
        %p294 = pneg %p138
        %s295 = smul.u32 16, %s25
        %p296 = scmp.lt.s32.totalorder %s295, 15
        %s297 = scalar_select %p296, %s295, 15
        %s298 = smul.addr %s297, 8
        %s299 = scalar_lea.vmem %s4, %s298
        %p300 = pneg %p167
        %p301 = pneg %p164
        %p302 = pneg %p195
        %p303 = pneg %p192
        %s304 = sand.u32 %s182, 1
        %s305 = scalar_lea.sflag [#allocation4], %s304
        %s306 = sand.u32 %s182, 1
        %s307 = smul.addr %s306, 8
        %s308 = scalar_lea.vmem [#allocation3], %s307
        %p309 = scmp.lt.s32.totalorder %s24, 1
        %s310 = scalar_select %p309, %s24, 1
        %p311 = scmp.lt.s32.totalorder %s26, 0
        %s312 = scalar_select %p311, %s26, 0
        %s313 = sadd.s32 %s312, %s310
        %s314 = smul.addr %s313, 8
        %s315 = scalar_lea.vmem %s0, %s314
        %s316 = smul.u32 16, %s25
        %p317 = scmp.lt.s32.totalorder %s316, 15
        %s318 = scalar_select %p317, %s316, 15
        %p319 = scmp.lt.s32.totalorder %s26, 0
        %s320 = scalar_select %p319, %s26, 0
        %s321 = sadd.s32 %s320, %s318
        %s322 = smul.addr %s321, 8
        %s323 = scalar_lea.vmem %s1, %s322
        %s324 = smul.u32 16, %s25
        %p325 = scmp.lt.s32.totalorder %s25, 0
        %s326 = scalar_select %p325, %s25, 0
        %s327 = scalar_lea.vmem %s2, %s326
        %p328 = scmp.lt.s32.totalorder %s24, 1
        %s329 = scalar_select %p328, %s24, 1
        %s330 = smul.addr %s329, 8
        %s331 = scalar_lea.vmem %s3, %s330
        %s332 = smul.u32 16, %s25
        %p333 = scmp.lt.s32.totalorder %s332, 15
        %s334 = scalar_select %p333, %s332, 15
        %s335 = smul.addr %s334, 8
        %s336 = scalar_lea.vmem %s4, %s335
        %s337 = smul.u32 16, %s25
        %p338 = scmp.eq.s32.totalorder %s26, 0
        // Predicated region
        $region41: #{tpu_custom_call.1} parent=39 // pred_check
          %p339 = pneg %p338
        $region42: #{tpu_custom_call.1} parent=39 // pred_check_branch
          %341 = sbr.rel (%p339) target = $region44
        $region43: #{tpu_custom_call.1} parent=39 // pred_region
          %342 = vst [vmem:[#allocation2] sm:$0xff] 0.0
        $region44: #{tpu_custom_call.1} parent=39 // pred_fallthru
          _
        %v343 = vld [vmem:[#allocation2] sm:$0xff]
        %v344 = vld [vmem:[%s315] sm:$0xff]
        %v345 = vld [vmem:[%s323] sm:$0xff]
        %v346 = vld [vmem:[%s323 + $0x8] sm:$0xff]
        %v347 = vld [vmem:[%s323 + $0x10] sm:$0xff]
        %v348 = vld [vmem:[%s323 + $0x18] sm:$0xff]
        %v349 = vld [vmem:[%s323 + $0x20] sm:$0xff]
        %v350 = vld [vmem:[%s323 + $0x28] sm:$0xff]
        %v351 = vld [vmem:[%s323 + $0x30] sm:$0xff]
        %v352 = vld [vmem:[%s323 + $0x38] sm:$0xff]
        %v353 = vld [vmem:[%s323 + $0x40] sm:$0xff]
        %v354 = vld [vmem:[%s323 + $0x48] sm:$0xff]
        %v355 = vld [vmem:[%s323 + $0x50] sm:$0xff]
        %v356 = vld [vmem:[%s323 + $0x58] sm:$0xff]
        %v357 = vld [vmem:[%s323 + $0x60] sm:$0xff]
        %v358 = vld [vmem:[%s323 + $0x68] sm:$0xff]
        %v359 = vld [vmem:[%s323 + $0x70] sm:$0xff]
        %v360 = vld [vmem:[%s323 + $0x78] sm:$0xff]
        %361 = vmatprep.subr.mxu0 0.0
        %362 = vmatpush1.xpose.msra.mxu0 %v345
        %363 = vmatprep.subr.mxu0 0.0
        %364 = vmatpush1.xpose.msra.mxu0 %v346
        %365 = vmatprep.subr.mxu0 0.0
        %366 = vmatpush1.xpose.msra.mxu0 %v347
        %367 = vmatprep.subr.mxu0 0.0
        %368 = vmatpush1.xpose.msra.mxu0 %v348
        %369 = vmatprep.subr.mxu0 0.0
        %370 = vmatpush1.xpose.msra.mxu0 %v349
        %371 = vmatprep.subr.mxu0 0.0
        %372 = vmatpush1.xpose.msra.mxu0 %v350
        %373 = vmatprep.subr.mxu0 0.0
        %374 = vmatpush1.xpose.msra.mxu0 %v351
        %375 = vmatprep.subr.mxu0 0.0
        %376 = vmatpush1.xpose.msra.mxu0 %v352
        %377 = vmatprep.subr.mxu0 0.0
        %378 = vmatpush1.xpose.msra.mxu0 %v353
        %379 = vmatprep.subr.mxu0 0.0
        %380 = vmatpush1.xpose.msra.mxu0 %v354
        %381 = vmatprep.subr.mxu0 0.0
        %382 = vmatpush1.xpose.msra.mxu0 %v355
        %383 = vmatprep.subr.mxu0 0.0
        %384 = vmatpush1.xpose.msra.mxu0 %v356
        %385 = vmatprep.subr.mxu0 0.0
        %386 = vmatpush1.xpose.msra.mxu0 %v357
        %387 = vmatprep.subr.mxu0 0.0
        %388 = vmatpush1.xpose.msra.mxu0 %v358
        %389 = vmatprep.subr.mxu0 0.0
        %390 = vmatpush1.xpose.msra.mxu0 %v359
        %391 = vmatprep.subr.mxu0 0.0
        %392 = vmatpush1.xpose.msra.mxu0 %v360
        %393 = vmatprep.subr.mxu0 0.0
        %394 = vmatpush1.xpose.msra.mxu0 0.0
        %395 = vmatprep.subr.mxu0 0.0
        %396 = vmatpush1.xpose.msra.mxu0 0.0
        %397 = vmatprep.subr.mxu0 0.0
        %398 = vmatpush1.xpose.msra.mxu0 0.0
        %399 = vmatprep.subr.mxu0 0.0
        %400 = vmatpush1.xpose.msra.mxu0 0.0
        %401 = vmatprep.subr.mxu0 0.0
        %402 = vmatpush1.xpose.msra.mxu0 0.0
        %403 = vmatprep.subr.mxu0 0.0
        %404 = vmatpush1.xpose.msra.mxu0 0.0
        %405 = vmatprep.subr.mxu0 0.0
        %406 = vmatpush1.xpose.msra.mxu0 0.0
        %407 = vmatprep.subr.mxu0 0.0
        %408 = vmatpush1.xpose.msra.mxu0 0.0
        %409 = vmatprep.subr.mxu0 0.0
        %410 = vmatpush1.xpose.msra.mxu0 0.0
        %411 = vmatprep.subr.mxu0 0.0
        %412 = vmatpush1.xpose.msra.mxu0 0.0
        %413 = vmatprep.subr.mxu0 0.0
        %414 = vmatpush1.xpose.msra.mxu0 0.0
        %415 = vmatprep.subr.mxu0 0.0
        %416 = vmatpush1.xpose.msra.mxu0 0.0
        %417 = vmatprep.subr.mxu0 0.0
        %418 = vmatpush1.xpose.msra.mxu0 0.0
        %419 = vmatprep.subr.mxu0 0.0
        %420 = vmatpush1.xpose.msra.mxu0 0.0
        %421 = vmatprep.subr.mxu0 0.0
        %422 = vmatpush1.xpose.msra.mxu0 0.0
        %423 = vmatprep.subr.mxu0 0.0
        %424 = vmatpush1.xpose.msra.mxu0 0.0
        %425 = vmatprep.mubr.f32.mxu0 0.0
        %426 = vmatmul.mubr.f32.gmra.mrb[0].mxu0 %v344
        %v427 = vpop.f32.mrb[0].mxu0
        %v428 = vadd.f32 0.0, %v427
        %v429 = vpop.f32.mrb[0].mxu0
        %430 = vdwg.mxu0
        %v431 = vadd.f32 %v343, %v428
        %432 = vst [vmem:[#allocation2] sm:$0xff] %v431
        // Predicated region
        $region45: #{tpu_custom_call.1} parent=39 // pred_check
          %p433 = pneg %p338
        $region46: #{tpu_custom_call.1} parent=39 // pred_check_branch
          %435 = sbr.rel (%p433) target = $region48
        $region47: #{tpu_custom_call.1} parent=39 // pred_region
          %v436 = vld [vmem:[%s331] sm:$0xff]
          %v437 = vld [vmem:[%s336] sm:$0xff]
          %v438 = vld [vmem:[%s336 + $0x8] sm:$0xff]
          %v439 = vld [vmem:[%s336 + $0x10] sm:$0xff]
          %v440 = vld [vmem:[%s336 + $0x18] sm:$0xff]
          %v441 = vld [vmem:[%s336 + $0x20] sm:$0xff]
          %v442 = vld [vmem:[%s336 + $0x28] sm:$0xff]
          %v443 = vld [vmem:[%s336 + $0x30] sm:$0xff]
          %v444 = vld [vmem:[%s336 + $0x38] sm:$0xff]
          %v445 = vld [vmem:[%s336 + $0x40] sm:$0xff]
          %v446 = vld [vmem:[%s336 + $0x48] sm:$0xff]
          %v447 = vld [vmem:[%s336 + $0x50] sm:$0xff]
          %v448 = vld [vmem:[%s336 + $0x58] sm:$0xff]
          %v449 = vld [vmem:[%s336 + $0x60] sm:$0xff]
          %v450 = vld [vmem:[%s336 + $0x68] sm:$0xff]
          %v451 = vld [vmem:[%s336 + $0x70] sm:$0xff]
          %v452 = vld [vmem:[%s336 + $0x78] sm:$0xff]
          %vm453 = vcmask 64512
          %v455 = vsel %vm453, %v436, 0
          %v458 = vsel %vm453, %v437, 0
          %v461 = vsel %vm453, %v438, 0
          %v464 = vsel %vm453, %v439, 0
          %v467 = vsel %vm453, %v440, 0
          %v470 = vsel %vm453, %v441, 0
          %v473 = vsel %vm453, %v442, 0
          %v476 = vsel %vm453, %v443, 0
          %v479 = vsel %vm453, %v444, 0
          %v482 = vsel %vm453, %v445, 0
          %v485 = vsel %vm453, %v446, 0
          %v488 = vsel %vm453, %v447, 0
          %v491 = vsel %vm453, %v448, 0
          %v494 = vsel %vm453, %v449, 0
          %v497 = vsel %vm453, %v450, 0
          %v500 = vsel %vm453, %v451, 0
          %v503 = vsel %vm453, %v452, 0
          %505 = vmatprep.subr.mxu0 0.0
          %506 = vmatpush1.xpose.msra.mxu0 %v458
          %507 = vmatprep.subr.mxu0 0.0
          %508 = vmatpush1.xpose.msra.mxu0 %v461
          %509 = vmatprep.subr.mxu0 0.0
          %510 = vmatpush1.xpose.msra.mxu0 %v464
          %511 = vmatprep.subr.mxu0 0.0
          %512 = vmatpush1.xpose.msra.mxu0 %v467
          %513 = vmatprep.subr.mxu0 0.0
          %514 = vmatpush1.xpose.msra.mxu0 %v470
          %515 = vmatprep.subr.mxu0 0.0
          %516 = vmatpush1.xpose.msra.mxu0 %v473
          %517 = vmatprep.subr.mxu0 0.0
          %518 = vmatpush1.xpose.msra.mxu0 %v476
          %519 = vmatprep.subr.mxu0 0.0
          %520 = vmatpush1.xpose.msra.mxu0 %v479
          %521 = vmatprep.subr.mxu0 0.0
          %522 = vmatpush1.xpose.msra.mxu0 %v482
          %523 = vmatprep.subr.mxu0 0.0
          %524 = vmatpush1.xpose.msra.mxu0 %v485
          %525 = vmatprep.subr.mxu0 0.0
          %526 = vmatpush1.xpose.msra.mxu0 %v488
          %527 = vmatprep.subr.mxu0 0.0
          %528 = vmatpush1.xpose.msra.mxu0 %v491
          %529 = vmatprep.subr.mxu0 0.0
          %530 = vmatpush1.xpose.msra.mxu0 %v494
          %531 = vmatprep.subr.mxu0 0.0
          %532 = vmatpush1.xpose.msra.mxu0 %v497
          %533 = vmatprep.subr.mxu0 0.0
          %534 = vmatpush1.xpose.msra.mxu0 %v500
          %535 = vmatprep.subr.mxu0 0.0
          %536 = vmatpush1.xpose.msra.mxu0 %v503
          %537 = vmatprep.subr.mxu0 0.0
          %538 = vmatpush1.xpose.msra.mxu0 0.0
          %539 = vmatprep.subr.mxu0 0.0
          %540 = vmatpush1.xpose.msra.mxu0 0.0
          %541 = vmatprep.subr.mxu0 0.0
          %542 = vmatpush1.xpose.msra.mxu0 0.0
          %543 = vmatprep.subr.mxu0 0.0
          %544 = vmatpush1.xpose.msra.mxu0 0.0
          %545 = vmatprep.subr.mxu0 0.0
          %546 = vmatpush1.xpose.msra.mxu0 0.0
          %547 = vmatprep.subr.mxu0 0.0
          %548 = vmatpush1.xpose.msra.mxu0 0.0
          %549 = vmatprep.subr.mxu0 0.0
          %550 = vmatpush1.xpose.msra.mxu0 0.0
          %551 = vmatprep.subr.mxu0 0.0
          %552 = vmatpush1.xpose.msra.mxu0 0.0
          %553 = vmatprep.subr.mxu0 0.0
          %554 = vmatpush1.xpose.msra.mxu0 0.0
          %555 = vmatprep.subr.mxu0 0.0
          %556 = vmatpush1.xpose.msra.mxu0 0.0
          %557 = vmatprep.subr.mxu0 0.0
          %558 = vmatpush1.xpose.msra.mxu0 0.0
          %559 = vmatprep.subr.mxu0 0.0
          %560 = vmatpush1.xpose.msra.mxu0 0.0
          %561 = vmatprep.subr.mxu0 0.0
          %562 = vmatpush1.xpose.msra.mxu0 0.0
          %563 = vmatprep.subr.mxu0 0.0
          %564 = vmatpush1.xpose.msra.mxu0 0.0
          %565 = vmatprep.subr.mxu0 0.0
          %566 = vmatpush1.xpose.msra.mxu0 0.0
          %567 = vmatprep.subr.mxu0 0.0
          %568 = vmatpush1.xpose.msra.mxu0 0.0
          %569 = vmatprep.mubr.f32.mxu0 0.0
          %570 = vmatmul.mubr.f32.gmra.mrb[0].mxu0 %v455
          %v571 = vpop.f32.mrb[0].mxu0
          %v572 = vadd.f32 0.0, %v571
          %v573 = vpop.f32.mrb[0].mxu0
          %574 = vdwg.mxu0
          %v575 = vld [vmem:[#allocation2] sm:$0xff]
          %v576 = vadd.f32 %v575, %v572
          %v577 = vld [vmem:[%s327] sm:$0x1]
          %v579 = vlaneseq
          %v580 = vshrl.u32 %v579, 7
          %v581 = vsub.s32 0, %v580
          %v582 = vrot.slane %v577, %v581
          %v584 = vadd.f32 %v576, %v582
          %585 = vst [vmem:[%s308] sm:$0xff] %v584
        $region48: #{tpu_custom_call.1} parent=39 // pred_fallthru
          _
        %s586 = sand.u32 %s182, 1
        %s587 = scalar_lea.sflag [#allocation4], %s586
        %s588 = sand.u32 %s182, 1
        %s589 = smul.addr %s588, 8
        %s590 = scalar_lea.vmem [#allocation3], %s589
        // Predicated region
        $region49: #{tpu_custom_call.1} parent=39 // pred_check
          %p591 = pneg %p192
        $region50: #{tpu_custom_call.1} parent=39 // pred_check_branch
          %593 = sbr.rel (%p591) target = $region52
        $region51: #{tpu_custom_call.1} parent=39 // pred_region
          %s595 = ssub.s32 128, 128
          %596 = vsyncadd %s587, %s595
          %s597 = sadd.s32 %s25, %s24
          %s598 = smul.addr %s597, 128
          %s599 = scalar_lea.hbm %s5, %s598
          %s601 = sshll.u32 %s590, 4
          %s602 = int_to_ptr.vmem [resolvable:$true] %s601
          %604 = dma.vmem_to_hbm [thread:$0]  %s602, 128, %s599, %s587
        $region52: #{tpu_custom_call.1} parent=39 // pred_fallthru
          _
      $region40: #{tpu_custom_call.1} parent=5 // pred_fallthru
        _
      %p605 = scmp.le.s32.totalorder 2, %s14
      // Predicated region
      $region53: #{tpu_custom_call.1} parent=5 // pred_check
        %p606 = pneg %p605
      $region54: #{tpu_custom_call.1} parent=5 // pred_check_branch
        %608 = sbr.rel (%p606) target = $region56
      $region55: #{tpu_custom_call.1} parent=5 // pred_region
        %s609 = ssub.s32 %s14, 2
        // Predicated region
        $region57: #{tpu_custom_call.1} parent=55 // pred_check
          %p610 = pneg %p198
        $region58: #{tpu_custom_call.1} parent=55 // pred_check_branch
          %612 = sbr.rel (%p610) target = $region60
        $region59: #{tpu_custom_call.1} parent=55 // pred_region
          %s613 = sand.u32 %s183, 1
          %s614 = scalar_lea.sflag [#allocation4], %s613
          %s615 = sand.u32 %s183, 1
          %s616 = smul.addr %s615, 8
          %s617 = scalar_lea.vmem [#allocation3], %s616
          %618 = dma.done %s614, 128
        $region60: #{tpu_custom_call.1} parent=55 // pred_fallthru
          _
      $region56: #{tpu_custom_call.1} parent=5 // pred_fallthru
        _
    $region6: #{tpu_custom_call.1} parent=1 // loop_footer
      %s18 = sadd.s32 1, %s14
    $region7: #{tpu_custom_call.1} parent=1 // loop_footer_branch
      %13 = sbr.rel target = $region3
    $region8: #{tpu_custom_call.1} parent=1 // loop_exit
      _
    %619 = vsyncpa [#allocation4], 1
    %s620 = scalar_lea.sflag [#allocation4], 1
    %621 = vsyncpa %s620, 1

</llo_original>
